<compile_context>
chip_gen: v7x
topology: tpu7x:2x2x1
jax: 0.10.0
libtpu: 0.0.40
codegen_flags: <defaults>
</compile_context>

<pallas_src>
import jax
import jax.numpy as jnp
from jax import lax
from jax.experimental import pallas as pl
from jax.experimental.pallas import tpu as pltpu


def _block_kernel(slab_ref, state_ref, w1p_ref, w2_ref, out_ref):
    """One grid step processes Nb batch elements.

    slab_ref:  (Nb, 9*Cin, HW)  im2col slab, lane-dense (HW in lanes)
    state_ref: (Nb, Cout, HW)   residual input, lane-dense
    w1p_ref:   (Cmid, 9*Cin)    conv1 weights packed for the fused K=9*Cin matmul
    w2_ref:    (Cout, Cmid)     conv2 1x1 weights (OIHW squeezed)
    out_ref:   (Nb, Cout, HW)   output, lane-dense
    """
    nb = slab_ref.shape[0]
    w1p = w1p_ref[...]
    w2 = w2_ref[...]
    # Static unroll over the (small) per-step batch; each image is one fused
    # K=9*Cin MXU matmul + one 1x1 matmul + VPU residual-add/ReLU.
    for b in range(nb):
        acc = jnp.dot(w1p, slab_ref[b],
                      preferred_element_type=jnp.float32)      # (Cmid, HW)
        hidden = jnp.maximum(acc, 0.0)                          # ReLU
        out2 = jnp.dot(w2, hidden,
                       preferred_element_type=jnp.float32)      # (Cout, HW)
        out_ref[b] = jnp.maximum(out2 + state_ref[b], 0.0).astype(out_ref.dtype)


def _pick_nb(n):
    """Batch elements per grid step: amortize step overhead but keep grid >= 2."""
    for nb in (8, 4, 2):
        if n % nb == 0 and n // nb >= 2:
            return nb
    return 1


def basic_block_2d_simple(x_nchw, state_nchw, w1_oihw, w2_oihw,
                          stride=1, bias=False):
    """Forward of BasicBlock2DSimple (stride=1, bias=False defaults)."""
    if stride != 1 or bias:
        raise NotImplementedError(
            "Pallas BasicBlock2DSimple kernel only supports stride=1, bias=False")

    N, Cin, H, W = x_nchw.shape
    Cmid = w1_oihw.shape[0]          # planes
    Cout = w2_oihw.shape[0]          # planes
    HW = H * W
    assert w1_oihw.shape == (Cmid, Cin, 3, 3)
    assert w2_oihw.shape == (Cout, Cmid, 1, 1)
    assert state_nchw.shape == (N, Cout, H, W)

    out_dtype = x_nchw.dtype

    # ---- wrapper glue (layout plumbing; all lane-dense for the kernel) ----
    # im2col slab: (N, 9*Cin, HW). Tap order = (dy, dx) outer, channel inner.
    xpad = jnp.pad(x_nchw.astype(jnp.float32),
                   ((0, 0), (0, 0), (1, 1), (1, 1)))            # (N, Cin, H+2, W+2)
    taps = [xpad[:, :, dy:dy + H, dx:dx + W].reshape(N, Cin, HW)
            for dy in range(3) for dx in range(3)]
    slab = jnp.concatenate(taps, axis=1)                         # (N, 9*Cin, HW)

    # conv1 weights packed to match the slab's K ordering: (O, ky, kx, I) flat.
    w1p = jnp.transpose(w1_oihw, (0, 2, 3, 1)).reshape(Cmid, 9 * Cin)
    w1p = w1p.astype(jnp.float32)
    w2 = w2_oihw.reshape(Cout, Cmid).astype(jnp.float32)

    # state / output: pure reshape of NCHW to (N, C, HW) -- no transpose.
    state = state_nchw.reshape(N, Cout, HW).astype(jnp.float32)

    nb = _pick_nb(N)
    grid = (N // nb,)

    flops = 2 * N * HW * (9 * Cin * Cmid + Cmid * Cout)
    bytes_accessed = 4 * (slab.size + state.size + N * Cout * HW
                          + w1p.size + w2.size)
    cost = pl.CostEstimate(flops=flops, transcendentals=0,
                           bytes_accessed=bytes_accessed)

    out_flat = pl.pallas_call(
        _block_kernel,
        out_shape=jax.ShapeDtypeStruct((N, Cout, HW), out_dtype),
        grid_spec=pltpu.PrefetchScalarGridSpec(
            num_scalar_prefetch=0,
            grid=grid,
            in_specs=[
                pl.BlockSpec((nb, 9 * Cin, HW), lambda n: (n, 0, 0)),
                pl.BlockSpec((nb, Cout, HW), lambda n: (n, 0, 0)),
                pl.BlockSpec((Cmid, 9 * Cin), lambda n: (0, 0)),
                pl.BlockSpec((Cout, Cmid), lambda n: (0, 0)),
            ],
            out_specs=pl.BlockSpec((nb, Cout, HW), lambda n: (n, 0, 0)),
        ),
        compiler_params=pltpu.CompilerParams(
            dimension_semantics=("parallel",)),
        cost_estimate=cost,
    )(slab, state, w1p, w2)

    return out_flat.reshape(N, Cout, H, W)


if __name__ == "__main__":
    key = jax.random.PRNGKey(0)
    N, C, H, W = 2, 4, 16, 16          # in_planes = planes = 4, stride = 1
    k_x, k_s, k1, k2 = jax.random.split(key, 4)

    x = jax.random.normal(k_x, (N, C, H, W), jnp.float32)
    state = jax.random.normal(k_s, (N, C, H, W), jnp.float32)

    # Deterministic kaiming-uniform-like init (PyTorch Conv2d default scale).
    b1 = 1.0 / ((C * 3 * 3) ** 0.5)
    w1 = jax.random.uniform(k1, (C, C, 3, 3), jnp.float32, -b1, b1)   # OIHW, 3x3
    b2 = 1.0 / ((C * 1 * 1) ** 0.5)
    w2 = jax.random.uniform(k2, (C, C, 1, 1), jnp.float32, -b2, b2)   # OIHW, 1x1

    y = basic_block_2d_simple(x, state, w1, w2)
    y = jax.block_until_ready(y)

    # Pure-JAX reference (matches the PyTorch forward semantics).
    dn = ("NCHW", "OIHW", "NCHW")
    ref = lax.conv_general_dilated(x, w1, (1, 1), "SAME", dimension_numbers=dn)
    ref = jax.nn.relu(ref)
    ref = lax.conv_general_dilated(ref, w2, (1, 1), "VALID", dimension_numbers=dn)
    ref = jax.nn.relu(ref + state)

    err = float(jnp.max(jnp.abs(y - ref)))
    assert y.shape == (N, C, H, W), y.shape
    assert err < 1e-4, f"max abs error {err}"
    print("KERNEL_OK")
</pallas_src>

<mosaic_0001>
module attributes {stable_mosaic.version = 11 : i64} {
  func.func @_block_kernel(%arg0: i32, %arg1: memref<1x36x256xf32, #tpu.memory_space<vmem>>, %arg2: memref<1x4x256xf32, #tpu.memory_space<vmem>>, %arg3: memref<4x36xf32, #tpu.memory_space<vmem>>, %arg4: memref<4x4xf32, #tpu.memory_space<vmem>>, %arg5: memref<1x4x256xf32, #tpu.memory_space<vmem>>) attributes {dimension_semantics = [#tpu.dimension_semantics<parallel>], iteration_bounds = array<i64: 2>, scalar_prefetch = 0 : i64, scratch_operands = 0 : i64, tpu.core_type = #tpu.core_type<tc>, window_params = [{transform_indices = @transform_0, window_bounds = array<i64: 1, 36, 256>}, {transform_indices = @transform_1, window_bounds = array<i64: 1, 4, 256>}, {pipeline_mode = #tpu.pipeline_mode<synchronous>, transform_indices = @transform_2, window_bounds = array<i64: 4, 36>}, {pipeline_mode = #tpu.pipeline_mode<synchronous>, transform_indices = @transform_3, window_bounds = array<i64: 4, 4>}, {transform_indices = @transform_4, window_bounds = array<i64: 1, 4, 256>}]} {
    %c0 = arith.constant 0 : index
    %c0_0 = arith.constant 0 : index
    %0 = vector.load %arg3[%c0, %c0_0] : memref<4x36xf32, #tpu.memory_space<vmem>>, vector<4x36xf32>
    %c0_1 = arith.constant 0 : index
    %c0_2 = arith.constant 0 : index
    %1 = vector.load %arg4[%c0_1, %c0_2] : memref<4x4xf32, #tpu.memory_space<vmem>>, vector<4x4xf32>
    %c0_3 = arith.constant 0 : index
    %c0_4 = arith.constant 0 : index
    %c0_5 = arith.constant 0 : index
    %2 = vector.load %arg1[%c0_3, %c0_4, %c0_5] : memref<1x36x256xf32, #tpu.memory_space<vmem>>, vector<1x36x256xf32>
    %3 = vector.shape_cast %2 : vector<1x36x256xf32> to vector<36x256xf32>
    %cst = arith.constant dense<0.000000e+00> : vector<4x256xf32>
    %4 = tpu.matmul %0, %3, %cst {dimension_numbers = #tpu.dot_dimension_numbers<[1], [0], [0], [1], [0, 0, 1, 1], [], []>} : vector<4x36xf32>, vector<36x256xf32>, vector<4x256xf32> -> vector<4x256xf32>
    %cst_6 = arith.constant 0.000000e+00 : f32
    %5 = vector.broadcast %cst_6 : f32 to vector<4x256xf32>
    %6 = arith.maximumf %4, %5 : vector<4x256xf32>
    %cst_7 = arith.constant dense<0.000000e+00> : vector<4x256xf32>
    %7 = tpu.matmul %1, %6, %cst_7 {dimension_numbers = #tpu.dot_dimension_numbers<[1], [0], [0], [1], [0, 0, 1, 1], [], []>} : vector<4x4xf32>, vector<4x256xf32>, vector<4x256xf32> -> vector<4x256xf32>
    %c0_8 = arith.constant 0 : index
    %c0_9 = arith.constant 0 : index
    %c0_10 = arith.constant 0 : index
    %8 = vector.load %arg2[%c0_8, %c0_9, %c0_10] : memref<1x4x256xf32, #tpu.memory_space<vmem>>, vector<1x4x256xf32>
    %9 = vector.shape_cast %8 : vector<1x4x256xf32> to vector<4x256xf32>
    %10 = arith.addf %7, %9 : vector<4x256xf32>
    %cst_11 = arith.constant 0.000000e+00 : f32
    %11 = vector.broadcast %cst_11 : f32 to vector<4x256xf32>
    %12 = arith.maximumf %10, %11 : vector<4x256xf32>
    %c0_12 = arith.constant 0 : index
    %c0_13 = arith.constant 0 : index
    %c0_14 = arith.constant 0 : index
    %13 = vector.load %arg5[%c0_12, %c0_13, %c0_14] : memref<1x4x256xf32, #tpu.memory_space<vmem>>, vector<1x4x256xf32>
    %14 = vector.shape_cast %13 : vector<1x4x256xf32> to vector<4x256xf32>
    %15 = vector.shape_cast %12 : vector<4x256xf32> to vector<1x4x256xf32>
    tpu.vector_store %arg5[%c0_12, %c0_13, %c0_14], %15 {strides = array<i32>} : memref<1x4x256xf32, #tpu.memory_space<vmem>>, vector<1x4x256xf32>,
    return
  }
  func.func @transform_0(%arg0: i32) -> (i32, i32, i32) {
    %c0_i32 = arith.constant 0 : i32
    %c0_i32_0 = arith.constant 0 : i32
    %c0_i32_1 = arith.constant 0 : i32
    return %arg0, %c0_i32, %c0_i32_0 : i32, i32, i32
  }
  func.func @transform_1(%arg0: i32) -> (i32, i32, i32) {
    %c0_i32 = arith.constant 0 : i32
    %c0_i32_0 = arith.constant 0 : i32
    %c0_i32_1 = arith.constant 0 : i32
    return %arg0, %c0_i32, %c0_i32_0 : i32, i32, i32
  }
  func.func @transform_2(%arg0: i32) -> (i32, i32) {
    %c0_i32 = arith.constant 0 : i32
    %c0_i32_0 = arith.constant 0 : i32
    %c0_i32_1 = arith.constant 0 : i32
    return %c0_i32, %c0_i32_0 : i32, i32
  }
  func.func @transform_3(%arg0: i32) -> (i32, i32) {
    %c0_i32 = arith.constant 0 : i32
    %c0_i32_0 = arith.constant 0 : i32
    %c0_i32_1 = arith.constant 0 : i32
    return %c0_i32, %c0_i32_0 : i32, i32
  }
  func.func @transform_4(%arg0: i32) -> (i32, i32, i32) {
    %c0_i32 = arith.constant 0 : i32
    %c0_i32_0 = arith.constant 0 : i32
    %c0_i32_1 = arith.constant 0 : i32
    return %arg0, %c0_i32, %c0_i32_0 : i32, i32, i32
  }
}

</mosaic_0001>

<llo_original>
// kernel: tpu_custom_call.1
$region0: #{tpu_custom_call.1}
  #allocation0 [shape = 'u32[]', space=smem, size = 0x4, offset = 0x4, fixed_abs, tag = 'smem constant byte address 0x4 - core index']
  #allocation1 [shape = 'u32[144,128]{1,0:T(1,128)}', space=vmem, size = 0x12000, scoped, tag = 'internal scratch']
  %s0 = inlined_call_operand.vmem [shape: f32[2,36,256], index: 0, kind: input, shape index: {}]
  %s1 = inlined_call_operand.vmem [shape: f32[2,4,256], index: 1, kind: input, shape index: {}]
  %s2 = inlined_call_operand.vmem [shape: f32[4,36], index: 2, kind: input, shape index: {}]
  %s3 = inlined_call_operand.vmem [shape: f32[4,4], index: 3, kind: input, shape index: {}]
  %s4 = inlined_call_operand.hbm [shape: f32[2,4,256], index: 4, kind: output, shape index: {}]
  %s5 = sld [smem:[#allocation0]]
  $region49: #{tpu_custom_call.1} parent=0
    _
  %s7 = ssub.s32 1, %s5
  %s8 = scalar_select 0, %s7, %s5
  $region1: #{tpu_custom_call.1} parent=0
    #allocation2 [shape = 'u8[8192]{0}', space=vmem, size = 0x2000, scoped, tag = 'output window, operand 0']
    #allocation3 [shape = 's32[2]{0}', space=sflag, size = 0x8, scoped, tag = 'scoped memory for tpu_custom_call.1']
    %9 = vsyncpa [#allocation3], 0
    %s10 = scalar_lea.sflag [#allocation3], 1
    %11 = vsyncpa %s10, 0
    loop: start=0, step=1, limit=4
    $region2: #{tpu_custom_call.1} parent=1 // loop_pre_header
      _
    $region3: #{tpu_custom_call.1} parent=1 // loop_header
      %s13 = sphi 0, %s17
      %p14 = scmp.ge.s32.totalorder %s13, 4
      %s23 = sphi 0, %s25
      %s26 = sphi 0, %s23
      %s27 = sphi 0, %s26
      %s43 = sphi 0, %s27
      %s49 = sphi 0, %s51
      %s52 = sphi 0, %s49
      %s53 = sphi 0, %s52
      %s69 = sphi 0, %s53
      %s73 = sphi 0, %s73
      %s75 = sphi 0, %s73
      %s76 = sphi 0, %s75
      %s90 = sphi 0, %s76
      %s94 = sphi 0, %s94
      %s96 = sphi 0, %s94
      %s97 = sphi 0, %s96
      %s111 = sphi 0, %s97
      %s117 = sphi 0, %s119
      %s120 = sphi 0, %s117
      %s121 = sphi 0, %s120
      %s137 = sphi 0, %s121
    $region4: #{tpu_custom_call.1} parent=1 // loop_header_branch
      %16 = sbr.rel (%p14) target = $region8
    $region5: #{tpu_custom_call.1} parent=1 // loop_body
      %s18 = ssub.s32 %s13, 1
      %s19 = ssub.s32 %s13, 2
      %s20 = sadd.s32 %s13, 1
      %s21 = ssub.s32 %s13, %s20
      %p22 = scmp.eq.s32.totalorder %s21, 0
      %s24 = sadd.s32 %s23, 1
      %s25 = scalar_select %p22, %s23, %s24
      %p28 = pneg %p22
      %p29 = scmp.eq.s32.totalorder %s13, 1
      %p30 = por %p28, %p29
      %p31 = scmp.ne.s32.totalorder %s23, %s26
      %p32 = scmp.eq.s32.totalorder %s13, 0
      %p33 = por %p31, %p32
      %p34 = scmp.ne.s32.totalorder %s23, %s26
      %p35 = scmp.eq.s32.totalorder %s18, 1
      %p36 = por %p34, %p35
      %p37 = scmp.ne.s32.totalorder %s26, %s27
      %p38 = scmp.eq.s32.totalorder %s18, 0
      %p39 = por %p37, %p38
      %p40 = scmp.ne.s32.totalorder %s26, %s27
      %p41 = scmp.eq.s32.totalorder %s19, 1
      %p42 = por %p40, %p41
      %p44 = scmp.ne.s32.totalorder %s27, %s43
      %p45 = scmp.eq.s32.totalorder %s19, 0
      %p46 = por %p44, %p45
      %s47 = ssub.s32 %s13, %s20
      %p48 = scmp.eq.s32.totalorder %s47, 0
      %s50 = sadd.s32 %s49, 1
      %s51 = scalar_select %p48, %s49, %s50
      %p54 = pneg %p48
      %p55 = scmp.eq.s32.totalorder %s13, 1
      %p56 = por %p54, %p55
      %p57 = scmp.ne.s32.totalorder %s49, %s52
      %p58 = scmp.eq.s32.totalorder %s13, 0
      %p59 = por %p57, %p58
      %p60 = scmp.ne.s32.totalorder %s49, %s52
      %p61 = scmp.eq.s32.totalorder %s18, 1
      %p62 = por %p60, %p61
      %p63 = scmp.ne.s32.totalorder %s52, %s53
      %p64 = scmp.eq.s32.totalorder %s18, 0
      %p65 = por %p63, %p64
      %p66 = scmp.ne.s32.totalorder %s52, %s53
      %p67 = scmp.eq.s32.totalorder %s19, 1
      %p68 = por %p66, %p67
      %p70 = scmp.ne.s32.totalorder %s53, %s69
      %p71 = scmp.eq.s32.totalorder %s19, 0
      %p72 = por %p70, %p71
      %s74 = sadd.s32 %s73, 1
      %p77 = scmp.eq.s32.totalorder %s13, 1
      %p78 = scmp.ne.s32.totalorder %s73, %s75
      %p79 = scmp.eq.s32.totalorder %s13, 0
      %p80 = por %p78, %p79
      %p81 = scmp.ne.s32.totalorder %s73, %s75
      %p82 = scmp.eq.s32.totalorder %s18, 1
      %p83 = por %p81, %p82
      %p84 = scmp.ne.s32.totalorder %s75, %s76
      %p85 = scmp.eq.s32.totalorder %s18, 0
      %p86 = por %p84, %p85
      %p87 = scmp.ne.s32.totalorder %s75, %s76
      %p88 = scmp.eq.s32.totalorder %s19, 1
      %p89 = por %p87, %p88
      %p91 = scmp.ne.s32.totalorder %s76, %s90
      %p92 = scmp.eq.s32.totalorder %s19, 0
      %p93 = por %p91, %p92
      %s95 = sadd.s32 %s94, 1
      %p98 = scmp.eq.s32.totalorder %s13, 1
      %p99 = scmp.ne.s32.totalorder %s94, %s96
      %p100 = scmp.eq.s32.totalorder %s13, 0
      %p101 = por %p99, %p100
      %p102 = scmp.ne.s32.totalorder %s94, %s96
      %p103 = scmp.eq.s32.totalorder %s18, 1
      %p104 = por %p102, %p103
      %p105 = scmp.ne.s32.totalorder %s96, %s97
      %p106 = scmp.eq.s32.totalorder %s18, 0
      %p107 = por %p105, %p106
      %p108 = scmp.ne.s32.totalorder %s96, %s97
      %p109 = scmp.eq.s32.totalorder %s19, 1
      %p110 = por %p108, %p109
      %p112 = scmp.ne.s32.totalorder %s97, %s111
      %p113 = scmp.eq.s32.totalorder %s19, 0
      %p114 = por %p112, %p113
      %s115 = ssub.s32 %s13, %s20
      %p116 = scmp.eq.s32.totalorder %s115, 0
      %s118 = sadd.s32 %s117, 1
      %s119 = scalar_select %p116, %s117, %s118
      %p122 = pneg %p116
      %p123 = scmp.eq.s32.totalorder %s13, 1
      %p124 = por %p122, %p123
      %p125 = scmp.ne.s32.totalorder %s117, %s120
      %p126 = scmp.eq.s32.totalorder %s13, 0
      %p127 = por %p125, %p126
      %p128 = scmp.ne.s32.totalorder %s117, %s120
      %p129 = scmp.eq.s32.totalorder %s18, 1
      %p130 = por %p128, %p129
      %p131 = scmp.ne.s32.totalorder %s120, %s121
      %p132 = scmp.eq.s32.totalorder %s18, 0
      %p133 = por %p131, %p132
      %p134 = scmp.ne.s32.totalorder %s120, %s121
      %p135 = scmp.eq.s32.totalorder %s19, 1
      %p136 = por %p134, %p135
      %p138 = scmp.ne.s32.totalorder %s121, %s137
      %p139 = scmp.eq.s32.totalorder %s19, 0
      %p140 = por %p138, %p139
      %p141 = scmp.le.s32.totalorder 1, %s13
      %p142 = scmp.lt.s32.totalorder %s13, 3
      %p143 = pnand %p141, %p142
      %p144 = pneg %p143
      // Predicated region
      $region9: #{tpu_custom_call.1} parent=5 // pred_check
        _
      $region10: #{tpu_custom_call.1} parent=5 // pred_check_branch
        %146 = sbr.rel (%p143) target = $region12
      $region11: #{tpu_custom_call.1} parent=5 // pred_region
        %s147 = ssub.s32 %s13, 1
        // Predicated region
        $region13: #{tpu_custom_call.1} parent=11 // pred_check
          %p148 = pneg %p86
        $region14: #{tpu_custom_call.1} parent=11 // pred_check_branch
          %150 = sbr.rel (%p148) target = $region16
        $region15: #{tpu_custom_call.1} parent=11 // pred_region
          _
        $region16: #{tpu_custom_call.1} parent=11 // pred_fallthru
          _
        // Predicated region
        $region17: #{tpu_custom_call.1} parent=11 // pred_check
          %p151 = pneg %p107
        $region18: #{tpu_custom_call.1} parent=11 // pred_check_branch
          %153 = sbr.rel (%p151) target = $region20
        $region19: #{tpu_custom_call.1} parent=11 // pred_region
          _
        $region20: #{tpu_custom_call.1} parent=11 // pred_fallthru
          _
      $region12: #{tpu_custom_call.1} parent=5 // pred_fallthru
        _
      %p154 = scmp.lt.s32.totalorder %s13, 2
      // Predicated region
      $region21: #{tpu_custom_call.1} parent=5 // pred_check
        %p155 = pneg %p154
      $region22: #{tpu_custom_call.1} parent=5 // pred_check_branch
        %157 = sbr.rel (%p155) target = $region24
      $region23: #{tpu_custom_call.1} parent=5 // pred_region
        // Predicated region
        $region25: #{tpu_custom_call.1} parent=23 // pred_check
          %p158 = pneg %p33
        $region26: #{tpu_custom_call.1} parent=23 // pred_check_branch
          %160 = sbr.rel (%p158) target = $region28
        $region27: #{tpu_custom_call.1} parent=23 // pred_region
          %p161 = scmp.lt.s32.totalorder %s13, 1
          %s162 = scalar_select %p161, %s13, 1
          %s163 = smul.addr %s162, 10
          %s164 = smul.addr %s163, 8
          %s165 = scalar_lea.vmem %s0, %s164
        $region28: #{tpu_custom_call.1} parent=23 // pred_fallthru
          _
        // Predicated region
        $region29: #{tpu_custom_call.1} parent=23 // pred_check
          %p166 = pneg %p59
        $region30: #{tpu_custom_call.1} parent=23 // pred_check_branch
          %168 = sbr.rel (%p166) target = $region32
        $region31: #{tpu_custom_call.1} parent=23 // pred_region
          %p169 = scmp.lt.s32.totalorder %s13, 1
          %s170 = scalar_select %p169, %s13, 1
          %s171 = smul.addr %s170, 2
          %s172 = smul.addr %s171, 4
          %s173 = scalar_lea.vmem %s1, %s172
        $region32: #{tpu_custom_call.1} parent=23 // pred_fallthru
          _
      $region24: #{tpu_custom_call.1} parent=5 // pred_fallthru
        _
      %p174 = scmp.le.s32.totalorder 1, %s13
      %p175 = scmp.lt.s32.totalorder %s13, 3
      %p176 = pnand %p174, %p175
      %p177 = pneg %p176
      // Predicated region
      $region33: #{tpu_custom_call.1} parent=5 // pred_check
        _
      $region34: #{tpu_custom_call.1} parent=5 // pred_check_branch
        %179 = sbr.rel (%p176) target = $region36
      $region35: #{tpu_custom_call.1} parent=5 // pred_region
        %s180 = ssub.s32 %s13, 1
        %p181 = scmp.lt.s32.totalorder %s18, 1
        %s182 = scalar_select %p181, %s18, 1
        %s183 = smul.addr %s182, 10
        %s184 = smul.addr %s183, 8
        %s185 = scalar_lea.vmem %s0, %s184
        %p186 = pneg %p39
        %p187 = pneg %p36
        %p188 = scmp.lt.s32.totalorder %s18, 1
        %s189 = scalar_select %p188, %s18, 1
        %s190 = smul.addr %s189, 2
        %s191 = smul.addr %s190, 4
        %s192 = scalar_lea.vmem %s1, %s191
        %p193 = pneg %p65
        %p194 = pneg %p62
        %p195 = pneg %p86
        %p196 = pneg %p83
        %p197 = pneg %p107
        %p198 = pneg %p104
        %p199 = pneg %p133
        %p200 = pneg %p130
        %s201 = sand.u32 %s120, 1
        %s202 = scalar_lea.sflag [#allocation3], %s201
        %s203 = sand.u32 %s120, 1
        %s204 = smul.addr %s203, 8
        %s205 = scalar_lea.vmem [#allocation2], %s204
        %p206 = scmp.lt.s32.totalorder %s18, 1
        %s207 = scalar_select %p206, %s18, 1
        %s208 = smul.addr %s207, 10
        %s209 = smul.addr %s208, 8
        %s210 = scalar_lea.vmem %s0, %s209
        %p211 = scmp.lt.s32.totalorder %s18, 1
        %s212 = scalar_select %p211, %s18, 1
        %s213 = smul.addr %s212, 2
        %s214 = smul.addr %s213, 4
        %s215 = scalar_lea.vmem %s1, %s214
        %v216 = vld [vmem:[%s2] sm:$0xf]
        %v217 = vld [vmem:[%s3] sm:$0xf]
        %v218 = vld [vmem:[%s210] sm:$0xff]
        %v219 = vld [vmem:[%s210 + $0x8] sm:$0xff]
        %v220 = vld [vmem:[%s210 + $0x10] sm:$0xff]
        %v221 = vld [vmem:[%s210 + $0x18] sm:$0xff]
        %v222 = vld [vmem:[%s210 + $0x20] sm:$0xff]
        %v223 = vld [vmem:[%s210 + $0x28] sm:$0xff]
        %v224 = vld [vmem:[%s210 + $0x30] sm:$0xff]
        %v225 = vld [vmem:[%s210 + $0x38] sm:$0xff]
        %v226 = vld [vmem:[%s210 + $0x40] sm:$0xf]
        %v227 = vld [vmem:[%s210 + $0x48] sm:$0xf]
        %vm228 = vcmask 293888
        %v230 = vsel %vm228, %v216, 0
        %vm232 = vcmask 1043456
        %v234 = vsel %vm232, %v226, 0
        %v237 = vsel %vm232, %v227, 0
        %239 = vmatprep.subr.mxu0 %v219
        %240 = vmatpush1.msra.mxu0 %v218
        %241 = vmatprep.subr.mxu0 %v221
        %242 = vmatpush1.msra.mxu0 %v220
        %243 = vmatprep.subr.mxu0 %v223
        %244 = vmatpush1.msra.mxu0 %v222
        %245 = vmatprep.subr.mxu0 %v225
        %246 = vmatpush1.msra.mxu0 %v224
        %247 = vmatprep.subr.mxu0 %v237
        %248 = vmatpush1.msra.mxu0 %v234
        %249 = vmatprep.subr.mxu0 0.0
        %250 = vmatpush1.msra.mxu0 0.0
        %251 = vmatprep.subr.mxu0 0.0
        %252 = vmatpush1.msra.mxu0 0.0
        %253 = vmatprep.subr.mxu0 0.0
        %254 = vmatpush1.msra.mxu0 0.0
        %255 = vmatprep.subr.mxu0 0.0
        %256 = vmatpush1.msra.mxu0 0.0
        %257 = vmatprep.subr.mxu0 0.0
        %258 = vmatpush1.msra.mxu0 0.0
        %259 = vmatprep.subr.mxu0 0.0
        %260 = vmatpush1.msra.mxu0 0.0
        %261 = vmatprep.subr.mxu0 0.0
        %262 = vmatpush1.msra.mxu0 0.0
        %263 = vmatprep.subr.mxu0 0.0
        %264 = vmatpush1.msra.mxu0 0.0
        %265 = vmatprep.subr.mxu0 0.0
        %266 = vmatpush1.msra.mxu0 0.0
        %267 = vmatprep.subr.mxu0 0.0
        %268 = vmatpush1.msra.mxu0 0.0
        %269 = vmatprep.subr.mxu0 0.0
        %270 = vmatpush1.msra.mxu0 0.0
        %271 = vmatprep.subr.mxu0 0.0
        %272 = vmatpush1.msra.mxu0 0.0
        %273 = vmatprep.subr.mxu0 0.0
        %274 = vmatpush1.msra.mxu0 0.0
        %275 = vmatprep.subr.mxu0 0.0
        %276 = vmatpush1.msra.mxu0 0.0
        %277 = vmatprep.subr.mxu0 0.0
        %278 = vmatpush1.msra.mxu0 0.0
        %279 = vmatprep.subr.mxu0 0.0
        %280 = vmatpush1.msra.mxu0 0.0
        %281 = vmatprep.subr.mxu0 0.0
        %282 = vmatpush1.msra.mxu0 0.0
        %283 = vmatprep.subr.mxu0 0.0
        %284 = vmatpush1.msra.mxu0 0.0
        %285 = vmatprep.subr.mxu0 0.0
        %286 = vmatpush1.msra.mxu0 0.0
        %287 = vmatprep.subr.mxu0 0.0
        %288 = vmatpush1.msra.mxu0 0.0
        %289 = vmatprep.subr.mxu0 0.0
        %290 = vmatpush1.msra.mxu0 0.0
        %291 = vmatprep.subr.mxu0 0.0
        %292 = vmatpush1.msra.mxu0 0.0
        %293 = vmatprep.subr.mxu0 0.0
        %294 = vmatpush1.msra.mxu0 0.0
        %295 = vmatprep.subr.mxu0 0.0
        %296 = vmatpush1.msra.mxu0 0.0
        %297 = vmatprep.subr.mxu0 0.0
        %298 = vmatpush1.msra.mxu0 0.0
        %299 = vmatprep.subr.mxu0 0.0
        %300 = vmatpush1.msra.mxu0 0.0
        %301 = vmatprep.subr.mxu0 0.0
        %302 = vmatpush1.msra.mxu0 0.0
        %303 = vmatprep.mubr.f32.mxu0 0.0
        %304 = vmatmul.mubr.f32.gmra.mrb[0].mxu0 %v230
        %v305 = vpop.f32.mrb[0].mxu0
        %v306 = vadd.f32 0.0, %v305
        %v307 = vpop.f32.mrb[0].mxu0
        %v308 = vadd.f32 0.0, %v307
        %309 = vdwg.mxu0
        %v310 = vmax.f32 %v306, 0.0
        %v311 = vmax.f32 %v308, 0.0
        %v312 = vld [vmem:[%s215] sm:$0xff]
        %v314 = vcombine.high %v312, %v312
        %vm316 = vcmask 31744
        %v318 = vsel %vm316, %v217, 0
        %v321 = vsel %vm232, %v310, 0
        %v324 = vsel %vm232, %v311, 0
        %326 = vmatprep.subr.mxu0 %v324
        %327 = vmatpush1.msra.mxu0 %v321
        %328 = vmatprep.subr.mxu0 0.0
        %329 = vmatpush1.msra.mxu0 0.0
        %330 = vmatprep.subr.mxu0 0.0
        %331 = vmatpush1.msra.mxu0 0.0
        %332 = vmatprep.subr.mxu0 0.0
        %333 = vmatpush1.msra.mxu0 0.0
        %334 = vmatprep.subr.mxu0 0.0
        %335 = vmatpush1.msra.mxu0 0.0
        %336 = vmatprep.subr.mxu0 0.0
        %337 = vmatpush1.msra.mxu0 0.0
        %338 = vmatprep.subr.mxu0 0.0
        %339 = vmatpush1.msra.mxu0 0.0
        %340 = vmatprep.subr.mxu0 0.0
        %341 = vmatpush1.msra.mxu0 0.0
        %342 = vmatprep.subr.mxu0 0.0
        %343 = vmatpush1.msra.mxu0 0.0
        %344 = vmatprep.subr.mxu0 0.0
        %345 = vmatpush1.msra.mxu0 0.0
        %346 = vmatprep.subr.mxu0 0.0
        %347 = vmatpush1.msra.mxu0 0.0
        %348 = vmatprep.subr.mxu0 0.0
        %349 = vmatpush1.msra.mxu0 0.0
        %350 = vmatprep.subr.mxu0 0.0
        %351 = vmatpush1.msra.mxu0 0.0
        %352 = vmatprep.subr.mxu0 0.0
        %353 = vmatpush1.msra.mxu0 0.0
        %354 = vmatprep.subr.mxu0 0.0
        %355 = vmatpush1.msra.mxu0 0.0
        %356 = vmatprep.subr.mxu0 0.0
        %357 = vmatpush1.msra.mxu0 0.0
        %358 = vmatprep.subr.mxu0 0.0
        %359 = vmatpush1.msra.mxu0 0.0
        %360 = vmatprep.subr.mxu0 0.0
        %361 = vmatpush1.msra.mxu0 0.0
        %362 = vmatprep.subr.mxu0 0.0
        %363 = vmatpush1.msra.mxu0 0.0
        %364 = vmatprep.subr.mxu0 0.0
        %365 = vmatpush1.msra.mxu0 0.0
        %366 = vmatprep.subr.mxu0 0.0
        %367 = vmatpush1.msra.mxu0 0.0
        %368 = vmatprep.subr.mxu0 0.0
        %369 = vmatpush1.msra.mxu0 0.0
        %370 = vmatprep.subr.mxu0 0.0
        %371 = vmatpush1.msra.mxu0 0.0
        %372 = vmatprep.subr.mxu0 0.0
        %373 = vmatpush1.msra.mxu0 0.0
        %374 = vmatprep.subr.mxu0 0.0
        %375 = vmatpush1.msra.mxu0 0.0
        %376 = vmatprep.subr.mxu0 0.0
        %377 = vmatpush1.msra.mxu0 0.0
        %378 = vmatprep.subr.mxu0 0.0
        %379 = vmatpush1.msra.mxu0 0.0
        %380 = vmatprep.subr.mxu0 0.0
        %381 = vmatpush1.msra.mxu0 0.0
        %382 = vmatprep.subr.mxu0 0.0
        %383 = vmatpush1.msra.mxu0 0.0
        %384 = vmatprep.subr.mxu0 0.0
        %385 = vmatpush1.msra.mxu0 0.0
        %386 = vmatprep.subr.mxu0 0.0
        %387 = vmatpush1.msra.mxu0 0.0
        %388 = vmatprep.subr.mxu0 0.0
        %389 = vmatpush1.msra.mxu0 0.0
        %390 = vmatprep.mubr.f32.mxu0 0.0
        %391 = vmatmul.mubr.f32.gmra.mrb[0].mxu0 %v318
        %v392 = vpop.f32.mrb[0].mxu0
        %v393 = vadd.f32 %v312, %v392
        %v394 = vpop.f32.mrb[0].mxu0
        %v395 = vadd.f32 %v314, %v394
        %396 = vdwg.mxu0
        %v397 = vmax.f32 %v393, 0.0
        %v398 = vmax.f32 %v395, 0.0
        %v401 = vcombine.low %v397, %v398
        %403 = vst [vmem:[%s205] sm:$0xff] %v401
        %s404 = sand.u32 %s120, 1
        %s405 = scalar_lea.sflag [#allocation3], %s404
        %s406 = sand.u32 %s120, 1
        %s407 = smul.addr %s406, 8
        %s408 = scalar_lea.vmem [#allocation2], %s407
        // Predicated region
        $region37: #{tpu_custom_call.1} parent=35 // pred_check
          %p409 = pneg %p130
        $region38: #{tpu_custom_call.1} parent=35 // pred_check_branch
          %411 = sbr.rel (%p409) target = $region40
        $region39: #{tpu_custom_call.1} parent=35 // pred_region
          %s413 = ssub.s32 128, 128
          %414 = vsyncadd %s405, %s413
          %s415 = smul.addr %s18, 2
          %s416 = smul.addr %s415, 64
          %s417 = scalar_lea.hbm %s4, %s416
          %s419 = sshll.u32 %s408, 4
          %s420 = int_to_ptr.vmem [resolvable:$true] %s419
          %422 = dma.vmem_to_hbm [thread:$0]  %s420, 128, %s417, %s405
        $region40: #{tpu_custom_call.1} parent=35 // pred_fallthru
          _
      $region36: #{tpu_custom_call.1} parent=5 // pred_fallthru
        _
      %p423 = scmp.le.s32.totalorder 2, %s13
      // Predicated region
      $region41: #{tpu_custom_call.1} parent=5 // pred_check
        %p424 = pneg %p423
      $region42: #{tpu_custom_call.1} parent=5 // pred_check_branch
        %426 = sbr.rel (%p424) target = $region44
      $region43: #{tpu_custom_call.1} parent=5 // pred_region
        %s427 = ssub.s32 %s13, 2
        // Predicated region
        $region45: #{tpu_custom_call.1} parent=43 // pred_check
          %p428 = pneg %p136
        $region46: #{tpu_custom_call.1} parent=43 // pred_check_branch
          %430 = sbr.rel (%p428) target = $region48
        $region47: #{tpu_custom_call.1} parent=43 // pred_region
          %s431 = sand.u32 %s121, 1
          %s432 = scalar_lea.sflag [#allocation3], %s431
          %s433 = sand.u32 %s121, 1
          %s434 = smul.addr %s433, 8
          %s435 = scalar_lea.vmem [#allocation2], %s434
          %436 = dma.done %s432, 128
        $region48: #{tpu_custom_call.1} parent=43 // pred_fallthru
          _
      $region44: #{tpu_custom_call.1} parent=5 // pred_fallthru
        _
    $region6: #{tpu_custom_call.1} parent=1 // loop_footer
      %s17 = sadd.s32 1, %s13
    $region7: #{tpu_custom_call.1} parent=1 // loop_footer_branch
      %12 = sbr.rel target = $region3
    $region8: #{tpu_custom_call.1} parent=1 // loop_exit
      _
    %437 = vsyncpa [#allocation3], 1
    %s438 = scalar_lea.sflag [#allocation3], 1
    %439 = vsyncpa %s438, 1

</llo_original>
